<compile_context>
chip_gen: v7x
topology: tpu7x:2x2x1
jax: 0.10.0
libtpu: 0.0.40
codegen_flags: <defaults>
</compile_context>

<pallas_src>
import functools

import jax
import jax.numpy as jnp
from jax.experimental import pallas as pl
from jax.experimental.pallas import tpu as pltpu


def _round_up(x: int, m: int) -> int:
    return ((x + m - 1) // m) * m


def _cdiv(a: int, b: int) -> int:
    return (a + b - 1) // b


def _qnet_kernel(xt_ref, w1_ref, b1_ref, w2_ref, b2_ref, w3_ref, b3_ref, qt_ref):
    """Fused 3-layer MLP on one transposed batch tile.

    xt_ref : (S, TB)   bf16  -- batch on the lane axis
    w*_ref : (out, in) bf16  -- PyTorch-native layout, VMEM-resident
    b*_ref : (out, 1)  f32
    qt_ref : (A8, TB)  f32   -- transposed, lane-dense Q-values
    """
    xt = xt_ref[...]

    h1 = jnp.dot(w1_ref[...], xt, preferred_element_type=jnp.float32) + b1_ref[...]
    h1 = jnp.maximum(h1, 0.0).astype(jnp.bfloat16)                   # (H, TB)

    h2 = jnp.dot(w2_ref[...], h1, preferred_element_type=jnp.float32) + b2_ref[...]
    h2 = jnp.maximum(h2, 0.0).astype(jnp.bfloat16)                   # (H, TB)

    qt = jnp.dot(w3_ref[...], h2, preferred_element_type=jnp.float32) + b3_ref[...]
    qt_ref[...] = qt.astype(qt_ref.dtype)                            # (A8, TB)


def _resident_spec(shape):
    # Constant block index -> block stays resident in VMEM across grid steps.
    # Single-buffer it (saves ~70 KB VMEM + a warmup DMA) when the installed
    # Pallas supports pipeline_mode; otherwise fall back to the default spec.
    index_map = lambda i: (0, 0)
    try:
        return pl.BlockSpec(shape, index_map, pipeline_mode=pl.Buffered(1))
    except (AttributeError, TypeError):
        return pl.BlockSpec(shape, index_map)


@functools.partial(jax.jit, static_argnames=("block_batch",))
def qnetwork_forward_pallas(x, w1, b1, w2, b2, w3, b3, *, block_batch=2048):
    """relu(relu(x @ W1^T + b1) @ W2^T + b2) @ W3^T + b3 in one Pallas kernel."""
    batch, state_size = x.shape
    hidden = w1.shape[0]
    action_size = w3.shape[0]
    a_pad = _round_up(action_size, 8)          # sublane-aligned Q-value rows

    # ---- batch tiling ------------------------------------------------------
    # Tiles must be multiples of 128 (lane axis of the transposed output).
    # Split the batch evenly; force >= 2 grid steps for training-size batches
    # so v7x's two TensorCores both get work (costs v5e/v6e one ~0.35us step).
    # NOTE: raise block_batch past ~8192 only with an explicit
    # vmem_limit_bytes check against v7x's 64 MiB VMEM.
    min_steps = 2 if batch >= 256 else 1
    num_steps = max(min_steps, _cdiv(batch, block_batch))
    tb = _round_up(_cdiv(batch, num_steps), 128)
    num_steps = _cdiv(batch, tb)
    padded_batch = tb * num_steps

    # ---- operand prep: transposed bf16 activations, resident bf16 weights ---
    xt = jnp.pad(x, ((0, padded_batch - batch), (0, 0))).T.astype(jnp.bfloat16)
    w1b = w1.astype(jnp.bfloat16)                                     # (H, S)
    w2b = w2.astype(jnp.bfloat16)                                     # (H, H)
    w3b = jnp.pad(w3, ((0, a_pad - action_size), (0, 0))).astype(jnp.bfloat16)
    b1c = jnp.reshape(b1, (hidden, 1)).astype(jnp.float32)
    b2c = jnp.reshape(b2, (hidden, 1)).astype(jnp.float32)
    b3c = jnp.pad(jnp.reshape(b3, (action_size, 1)).astype(jnp.float32),
                  ((0, a_pad - action_size), (0, 0)))

    qt = pl.pallas_call(
        _qnet_kernel,
        out_shape=jax.ShapeDtypeStruct((a_pad, padded_batch), jnp.float32),
        grid_spec=pltpu.PrefetchScalarGridSpec(
            num_scalar_prefetch=0,
            grid=(num_steps,),
            in_specs=[
                pl.BlockSpec((state_size, tb), lambda i: (0, i)),  # x^T tile
                _resident_spec((hidden, state_size)),              # W1
                _resident_spec((hidden, 1)),                       # b1
                _resident_spec((hidden, hidden)),                  # W2
                _resident_spec((hidden, 1)),                       # b2
                _resident_spec((a_pad, hidden)),                   # W3 (row-padded)
                _resident_spec((a_pad, 1)),                        # b3 (row-padded)
            ],
            out_specs=pl.BlockSpec((a_pad, tb), lambda i: (0, i)),
        ),
        compiler_params=pltpu.CompilerParams(
            dimension_semantics=("parallel",),
        ),
    )(xt, w1b, b1c, w2b, b2c, w3b, b3c)

    # Tiny (A, padded_batch) slab -> back to the PyTorch (batch, A) layout.
    return qt[:action_size, :batch].T


def qnetwork_forward(x, *params, block_batch=2048, min_pallas_batch=64):
    """Acting-path batches (1-32 rows) can't amortize pallas_call fixed cost;
    use a plain fused XLA MLP there and reserve the kernel for replay batches."""
    if x.shape[0] < min_pallas_batch:
        return reference_forward(x, *params)
    return qnetwork_forward_pallas(x, *params, block_batch=block_batch)


def init_params(key, state_size, action_size, hidden=128):
    """PyTorch nn.Linear init: U(-1/sqrt(fan_in), 1/sqrt(fan_in)). Weights are
    stored in PyTorch-native (out_features, in_features) layout, biases 1-D."""
    def linear(k, fan_in, fan_out):
        kw, kb = jax.random.split(k)
        bound = 1.0 / jnp.sqrt(float(fan_in))
        w = jax.random.uniform(kw, (fan_out, fan_in), jnp.float32, -bound, bound)
        b = jax.random.uniform(kb, (fan_out,), jnp.float32, -bound, bound)
        return w, b

    k1, k2, k3 = jax.random.split(key, 3)
    w1, b1 = linear(k1, state_size, hidden)
    w2, b2 = linear(k2, hidden, hidden)
    w3, b3 = linear(k3, hidden, action_size)
    return w1, b1, w2, b2, w3, b3


def reference_forward(x, w1, b1, w2, b2, w3, b3):
    h1 = jnp.maximum(x @ w1.T + b1, 0.0)
    h2 = jnp.maximum(h1 @ w2.T + b2, 0.0)
    return h2 @ w3.T + b3


if __name__ == "__main__":
    state_size, action_size = 16, 4
    key = jax.random.PRNGKey(0)
    kp, kx1, kx2 = jax.random.split(key, 3)
    params = init_params(kp, state_size, action_size)

    # Small acting-sized batch through the Pallas path (single grid step).
    x_small = jax.random.normal(kx1, (8, state_size), jnp.float32)
    out_small = jax.block_until_ready(qnetwork_forward_pallas(x_small, *params))
    ref_small = reference_forward(x_small, *params)
    assert out_small.shape == (8, action_size)
    # bf16 matmul inputs with f32 accumulation: relaxed tolerance vs f32 ref.
    assert jnp.allclose(out_small, ref_small, atol=3e-2, rtol=3e-2), \
        "small-batch mismatch vs JAX reference"

    # Replay-buffer-style batch that is not a tile multiple: exercises the
    # 2-step "parallel" grid, resident weight blocks and trailing-tile padding.
    x_big = jax.random.normal(kx2, (300, state_size), jnp.float32)
    out_big = jax.block_until_ready(qnetwork_forward_pallas(x_big, *params))
    ref_big = reference_forward(x_big, *params)
    assert out_big.shape == (300, action_size)
    assert jnp.allclose(out_big, ref_big, atol=3e-2, rtol=3e-2), \
        "large-batch mismatch vs JAX reference"

    print("KERNEL_OK")
</pallas_src>

<mosaic_0001>
module attributes {stable_mosaic.version = 11 : i64} {
  func.func @_qnet_kernel(%arg0: i32, %arg1: memref<16x128xbf16, #tpu.memory_space<vmem>>, %arg2: memref<128x16xbf16, #tpu.memory_space<vmem>>, %arg3: memref<128x1xf32, #tpu.memory_space<vmem>>, %arg4: memref<128x128xbf16, #tpu.memory_space<vmem>>, %arg5: memref<128x1xf32, #tpu.memory_space<vmem>>, %arg6: memref<8x128xbf16, #tpu.memory_space<vmem>>, %arg7: memref<8x1xf32, #tpu.memory_space<vmem>>, %arg8: memref<8x128xf32, #tpu.memory_space<vmem>>) attributes {dimension_semantics = [#tpu.dimension_semantics<parallel>], iteration_bounds = array<i64: 1>, scalar_prefetch = 0 : i64, scratch_operands = 0 : i64, tpu.core_type = #tpu.core_type<tc>, window_params = [{transform_indices = @transform_0, window_bounds = array<i64: 16, 128>}, {pipeline_mode = #tpu.pipeline_mode<synchronous>, transform_indices = @transform_1, window_bounds = array<i64: 128, 16>}, {pipeline_mode = #tpu.pipeline_mode<synchronous>, transform_indices = @transform_2, window_bounds = array<i64: 128, 1>}, {pipeline_mode = #tpu.pipeline_mode<synchronous>, transform_indices = @transform_3, window_bounds = array<i64: 128, 128>}, {pipeline_mode = #tpu.pipeline_mode<synchronous>, transform_indices = @transform_4, window_bounds = array<i64: 128, 1>}, {pipeline_mode = #tpu.pipeline_mode<synchronous>, transform_indices = @transform_5, window_bounds = array<i64: 8, 128>}, {pipeline_mode = #tpu.pipeline_mode<synchronous>, transform_indices = @transform_6, window_bounds = array<i64: 8, 1>}, {transform_indices = @transform_7, window_bounds = array<i64: 8, 128>}]} {
    %c0 = arith.constant 0 : index
    %c0_0 = arith.constant 0 : index
    %0 = vector.load %arg1[%c0, %c0_0] : memref<16x128xbf16, #tpu.memory_space<vmem>>, vector<16x128xbf16>
    %c0_1 = arith.constant 0 : index
    %c0_2 = arith.constant 0 : index
    %1 = vector.load %arg2[%c0_1, %c0_2] : memref<128x16xbf16, #tpu.memory_space<vmem>>, vector<128x16xbf16>
    %cst = arith.constant dense<0.000000e+00> : vector<128x128xf32>
    %2 = tpu.matmul %1, %0, %cst {dimension_numbers = #tpu.dot_dimension_numbers<[1], [0], [0], [1], [0, 0, 1, 1], [], []>} : vector<128x16xbf16>, vector<16x128xbf16>, vector<128x128xf32> -> vector<128x128xf32>
    %c0_3 = arith.constant 0 : index
    %c0_4 = arith.constant 0 : index
    %3 = vector.load %arg3[%c0_3, %c0_4] : memref<128x1xf32, #tpu.memory_space<vmem>>, vector<128x1xf32>
    %4 = vector.broadcast %3 : vector<128x1xf32> to vector<128x128xf32>
    %5 = arith.addf %2, %4 : vector<128x128xf32>
    %cst_5 = arith.constant 0.000000e+00 : f32
    %6 = vector.broadcast %cst_5 : f32 to vector<128x128xf32>
    %7 = arith.maximumf %5, %6 : vector<128x128xf32>
    %8 = arith.truncf %7 : vector<128x128xf32> to vector<128x128xbf16>
    %c0_6 = arith.constant 0 : index
    %c0_7 = arith.constant 0 : index
    %9 = vector.load %arg4[%c0_6, %c0_7] : memref<128x128xbf16, #tpu.memory_space<vmem>>, vector<128x128xbf16>
    %cst_8 = arith.constant dense<0.000000e+00> : vector<128x128xf32>
    %10 = tpu.matmul %9, %8, %cst_8 {dimension_numbers = #tpu.dot_dimension_numbers<[1], [0], [0], [1], [0, 0, 1, 1], [], []>} : vector<128x128xbf16>, vector<128x128xbf16>, vector<128x128xf32> -> vector<128x128xf32>
    %c0_9 = arith.constant 0 : index
    %c0_10 = arith.constant 0 : index
    %11 = vector.load %arg5[%c0_9, %c0_10] : memref<128x1xf32, #tpu.memory_space<vmem>>, vector<128x1xf32>
    %12 = vector.broadcast %11 : vector<128x1xf32> to vector<128x128xf32>
    %13 = arith.addf %10, %12 : vector<128x128xf32>
    %cst_11 = arith.constant 0.000000e+00 : f32
    %14 = vector.broadcast %cst_11 : f32 to vector<128x128xf32>
    %15 = arith.maximumf %13, %14 : vector<128x128xf32>
    %16 = arith.truncf %15 : vector<128x128xf32> to vector<128x128xbf16>
    %c0_12 = arith.constant 0 : index
    %c0_13 = arith.constant 0 : index
    %17 = vector.load %arg6[%c0_12, %c0_13] : memref<8x128xbf16, #tpu.memory_space<vmem>>, vector<8x128xbf16>
    %cst_14 = arith.constant dense<0.000000e+00> : vector<8x128xf32>
    %18 = tpu.matmul %17, %16, %cst_14 {dimension_numbers = #tpu.dot_dimension_numbers<[1], [0], [0], [1], [0, 0, 1, 1], [], []>} : vector<8x128xbf16>, vector<128x128xbf16>, vector<8x128xf32> -> vector<8x128xf32>
    %c0_15 = arith.constant 0 : index
    %c0_16 = arith.constant 0 : index
    %19 = vector.load %arg7[%c0_15, %c0_16] : memref<8x1xf32, #tpu.memory_space<vmem>>, vector<8x1xf32>
    %20 = vector.broadcast %19 : vector<8x1xf32> to vector<8x128xf32>
    %21 = arith.addf %18, %20 : vector<8x128xf32>
    %c0_17 = arith.constant 0 : index
    %c0_18 = arith.constant 0 : index
    %22 = vector.load %arg8[%c0_17, %c0_18] : memref<8x128xf32, #tpu.memory_space<vmem>>, vector<8x128xf32>
    tpu.vector_store %arg8[%c0_17, %c0_18], %21 {strides = array<i32>} : memref<8x128xf32, #tpu.memory_space<vmem>>, vector<8x128xf32>,
    return
  }
  func.func @transform_0(%arg0: i32) -> (i32, i32) {
    %c0_i32 = arith.constant 0 : i32
    %c0_i32_0 = arith.constant 0 : i32
    return %c0_i32, %arg0 : i32, i32
  }
  func.func @transform_1(%arg0: i32) -> (i32, i32) {
    %c0_i32 = arith.constant 0 : i32
    %c0_i32_0 = arith.constant 0 : i32
    %c0_i32_1 = arith.constant 0 : i32
    return %c0_i32, %c0_i32_0 : i32, i32
  }
  func.func @transform_2(%arg0: i32) -> (i32, i32) {
    %c0_i32 = arith.constant 0 : i32
    %c0_i32_0 = arith.constant 0 : i32
    %c0_i32_1 = arith.constant 0 : i32
    return %c0_i32, %c0_i32_0 : i32, i32
  }
  func.func @transform_3(%arg0: i32) -> (i32, i32) {
    %c0_i32 = arith.constant 0 : i32
    %c0_i32_0 = arith.constant 0 : i32
    %c0_i32_1 = arith.constant 0 : i32
    return %c0_i32, %c0_i32_0 : i32, i32
  }
  func.func @transform_4(%arg0: i32) -> (i32, i32) {
    %c0_i32 = arith.constant 0 : i32
    %c0_i32_0 = arith.constant 0 : i32
    %c0_i32_1 = arith.constant 0 : i32
    return %c0_i32, %c0_i32_0 : i32, i32
  }
  func.func @transform_5(%arg0: i32) -> (i32, i32) {
    %c0_i32 = arith.constant 0 : i32
    %c0_i32_0 = arith.constant 0 : i32
    %c0_i32_1 = arith.constant 0 : i32
    return %c0_i32, %c0_i32_0 : i32, i32
  }
  func.func @transform_6(%arg0: i32) -> (i32, i32) {
    %c0_i32 = arith.constant 0 : i32
    %c0_i32_0 = arith.constant 0 : i32
    %c0_i32_1 = arith.constant 0 : i32
    return %c0_i32, %c0_i32_0 : i32, i32
  }
  func.func @transform_7(%arg0: i32) -> (i32, i32) {
    %c0_i32 = arith.constant 0 : i32
    %c0_i32_0 = arith.constant 0 : i32
    return %c0_i32, %arg0 : i32, i32
  }
}

</mosaic_0001>

<llo_original>
// kernel: qnetwork_forward_pallas.1
$region0: #{qnetwork_forward_pallas.1}
  #allocation0 [shape = 'u32[]', space=smem, size = 0x4, offset = 0x4, fixed_abs, tag = 'smem constant byte address 0x4 - core index']
  #allocation1 [shape = 'u32[144,128]{1,0:T(1,128)}', space=vmem, size = 0x12000, scoped, tag = 'internal scratch']
  %s0 = inlined_call_operand.vmem [shape: bf16[16,128], index: 0, kind: input, shape index: {}]
  %s1 = inlined_call_operand.vmem [shape: bf16[128,16], index: 1, kind: input, shape index: {}]
  %s2 = inlined_call_operand.vmem [shape: f32[128,1], index: 2, kind: input, shape index: {}]
  %s3 = inlined_call_operand.vmem [shape: bf16[128,128], index: 3, kind: input, shape index: {}]
  %s4 = inlined_call_operand.vmem [shape: f32[128,1], index: 4, kind: input, shape index: {}]
  %s5 = inlined_call_operand.vmem [shape: bf16[8,128], index: 5, kind: input, shape index: {}]
  %s6 = inlined_call_operand.vmem [shape: f32[8,1], index: 6, kind: input, shape index: {}]
  %s7 = inlined_call_operand.vmem [shape: f32[8,128], index: 7, kind: output, shape index: {}]
  %s8 = sld [smem:[#allocation0]]
  $region38: #{qnetwork_forward_pallas.1} parent=0
    _
  %s10 = ssub.s32 1, %s8
  %s11 = scalar_select 0, %s10, %s8
  // Predicated region
  $region2: #{qnetwork_forward_pallas.1} parent=0 // pred_check
    _
  $region3: #{qnetwork_forward_pallas.1} parent=0 // pred_check_branch
    %13 = sbr.rel (0) target = $region5
  $region4: #{qnetwork_forward_pallas.1} parent=0 // pred_region
    _
  $region5: #{qnetwork_forward_pallas.1} parent=0 // pred_fallthru
    _
  // Predicated region
  $region6: #{qnetwork_forward_pallas.1} parent=0 // pred_check
    _
  $region7: #{qnetwork_forward_pallas.1} parent=0 // pred_check_branch
    %15 = sbr.rel (0) target = $region9
  $region8: #{qnetwork_forward_pallas.1} parent=0 // pred_region
    _
  $region9: #{qnetwork_forward_pallas.1} parent=0 // pred_fallthru
    _
  // Predicated region
  $region10: #{qnetwork_forward_pallas.1} parent=0 // pred_check
    _
  $region11: #{qnetwork_forward_pallas.1} parent=0 // pred_check_branch
    %17 = sbr.rel (0) target = $region13
  $region12: #{qnetwork_forward_pallas.1} parent=0 // pred_region
    _
  $region13: #{qnetwork_forward_pallas.1} parent=0 // pred_fallthru
    _
  // Predicated region
  $region14: #{qnetwork_forward_pallas.1} parent=0 // pred_check
    _
  $region15: #{qnetwork_forward_pallas.1} parent=0 // pred_check_branch
    %19 = sbr.rel (0) target = $region17
  $region16: #{qnetwork_forward_pallas.1} parent=0 // pred_region
    _
  $region17: #{qnetwork_forward_pallas.1} parent=0 // pred_fallthru
    _
  // Predicated region
  $region18: #{qnetwork_forward_pallas.1} parent=0 // pred_check
    _
  $region19: #{qnetwork_forward_pallas.1} parent=0 // pred_check_branch
    %21 = sbr.rel (0) target = $region21
  $region20: #{qnetwork_forward_pallas.1} parent=0 // pred_region
    _
  $region21: #{qnetwork_forward_pallas.1} parent=0 // pred_fallthru
    _
  // Predicated region
  $region22: #{qnetwork_forward_pallas.1} parent=0 // pred_check
    _
  $region23: #{qnetwork_forward_pallas.1} parent=0 // pred_check_branch
    %23 = sbr.rel (0) target = $region25
  $region24: #{qnetwork_forward_pallas.1} parent=0 // pred_region
    _
  $region25: #{qnetwork_forward_pallas.1} parent=0 // pred_fallthru
    _
  // Predicated region
  $region26: #{qnetwork_forward_pallas.1} parent=0 // pred_check
    _
  $region27: #{qnetwork_forward_pallas.1} parent=0 // pred_check_branch
    %25 = sbr.rel (0) target = $region29
  $region28: #{qnetwork_forward_pallas.1} parent=0 // pred_region
    _
  $region29: #{qnetwork_forward_pallas.1} parent=0 // pred_fallthru
    _
  %v27 = vld [vmem:[%s0] sm:$0xf]
  %v28 = vld [vmem:[%s0 + $0x4] sm:$0xf]
  %v29 = vld [vmem:[%s1] sm:$0xf]
  %v30 = vld [vmem:[%s1 + $0x4] sm:$0xf]
  %v31 = vld [vmem:[%s1 + $0x8] sm:$0xf]
  %v32 = vld [vmem:[%s1 + $0xc] sm:$0xf]
  %v33 = vld [vmem:[%s1 + $0x10] sm:$0xf]
  %v34 = vld [vmem:[%s1 + $0x14] sm:$0xf]
  %v35 = vld [vmem:[%s1 + $0x18] sm:$0xf]
  %v36 = vld [vmem:[%s1 + $0x1c] sm:$0xf]
  %v37 = vld [vmem:[%s1 + $0x20] sm:$0xf]
  %v38 = vld [vmem:[%s1 + $0x24] sm:$0xf]
  %v39 = vld [vmem:[%s1 + $0x28] sm:$0xf]
  %v40 = vld [vmem:[%s1 + $0x2c] sm:$0xf]
  %v41 = vld [vmem:[%s1 + $0x30] sm:$0xf]
  %v42 = vld [vmem:[%s1 + $0x34] sm:$0xf]
  %v43 = vld [vmem:[%s1 + $0x38] sm:$0xf]
  %v44 = vld [vmem:[%s1 + $0x3c] sm:$0xf]
  %v45 = vld [vmem:[%s2] sm:$0xff]
  %v46 = vld [vmem:[%s2 + $0x8] sm:$0xff]
  %v47 = vld [vmem:[%s2 + $0x10] sm:$0xff]
  %v48 = vld [vmem:[%s2 + $0x18] sm:$0xff]
  %v49 = vld [vmem:[%s2 + $0x20] sm:$0xff]
  %v50 = vld [vmem:[%s2 + $0x28] sm:$0xff]
  %v51 = vld [vmem:[%s2 + $0x30] sm:$0xff]
  %v52 = vld [vmem:[%s2 + $0x38] sm:$0xff]
  %v53 = vld [vmem:[%s2 + $0x40] sm:$0xff]
  %v54 = vld [vmem:[%s2 + $0x48] sm:$0xff]
  %v55 = vld [vmem:[%s2 + $0x50] sm:$0xff]
  %v56 = vld [vmem:[%s2 + $0x58] sm:$0xff]
  %v57 = vld [vmem:[%s2 + $0x60] sm:$0xff]
  %v58 = vld [vmem:[%s2 + $0x68] sm:$0xff]
  %v59 = vld [vmem:[%s2 + $0x70] sm:$0xff]
  %v60 = vld [vmem:[%s2 + $0x78] sm:$0xff]
  %62 = vset.pattern.permute.xlu0 0
  %63 = vperm.xlu0 %62, %v45
  %v64 = vpop.permute.xlu0 %63
  %67 = vset.pattern.permute.xlu0 0
  %68 = vperm.xlu0 %67, %v46
  %v69 = vpop.permute.xlu0 %68
  %72 = vset.pattern.permute.xlu0 0
  %73 = vperm.xlu0 %72, %v47
  %v74 = vpop.permute.xlu0 %73
  %77 = vset.pattern.permute.xlu0 0
  %78 = vperm.xlu0 %77, %v48
  %v79 = vpop.permute.xlu0 %78
  %82 = vset.pattern.permute.xlu0 0
  %83 = vperm.xlu0 %82, %v49
  %v84 = vpop.permute.xlu0 %83
  %87 = vset.pattern.permute.xlu0 0
  %88 = vperm.xlu0 %87, %v50
  %v89 = vpop.permute.xlu0 %88
  %92 = vset.pattern.permute.xlu0 0
  %93 = vperm.xlu0 %92, %v51
  %v94 = vpop.permute.xlu0 %93
  %97 = vset.pattern.permute.xlu0 0
  %98 = vperm.xlu0 %97, %v52
  %v99 = vpop.permute.xlu0 %98
  %102 = vset.pattern.permute.xlu0 0
  %103 = vperm.xlu0 %102, %v53
  %v104 = vpop.permute.xlu0 %103
  %107 = vset.pattern.permute.xlu0 0
  %108 = vperm.xlu0 %107, %v54
  %v109 = vpop.permute.xlu0 %108
  %112 = vset.pattern.permute.xlu0 0
  %113 = vperm.xlu0 %112, %v55
  %v114 = vpop.permute.xlu0 %113
  %117 = vset.pattern.permute.xlu0 0
  %118 = vperm.xlu0 %117, %v56
  %v119 = vpop.permute.xlu0 %118
  %122 = vset.pattern.permute.xlu0 0
  %123 = vperm.xlu0 %122, %v57
  %v124 = vpop.permute.xlu0 %123
  %127 = vset.pattern.permute.xlu0 0
  %128 = vperm.xlu0 %127, %v58
  %v129 = vpop.permute.xlu0 %128
  %132 = vset.pattern.permute.xlu0 0
  %133 = vperm.xlu0 %132, %v59
  %v134 = vpop.permute.xlu0 %133
  %137 = vset.pattern.permute.xlu0 0
  %138 = vperm.xlu0 %137, %v60
  %v139 = vpop.permute.xlu0 %138
  %v157 = vunpack.c.l.b16 %v29
  %v158 = vunpack.c.l.b16 %v30
  %v159 = vunpack.c.l.b16 %v31
  %v160 = vunpack.c.l.b16 %v32
  %v161 = vunpack.c.l.b16 %v33
  %v162 = vunpack.c.l.b16 %v34
  %v163 = vunpack.c.l.b16 %v35
  %v164 = vunpack.c.l.b16 %v36
  %v165 = vunpack.c.l.b16 %v37
  %v166 = vunpack.c.l.b16 %v38
  %v167 = vunpack.c.l.b16 %v39
  %v168 = vunpack.c.l.b16 %v40
  %v169 = vunpack.c.l.b16 %v41
  %v170 = vunpack.c.l.b16 %v42
  %v171 = vunpack.c.l.b16 %v43
  %v172 = vunpack.c.l.b16 %v44
  %v173 = vpack.c.b16 %v158, %v157
  %v174 = vpack.c.b16 %v160, %v159
  %v175 = vpack.c.b16 %v162, %v161
  %v176 = vpack.c.b16 %v164, %v163
  %v177 = vpack.c.b16 %v166, %v165
  %v178 = vpack.c.b16 %v168, %v167
  %v179 = vpack.c.b16 %v170, %v169
  %v180 = vpack.c.b16 %v172, %v171
  %v183 = vunpack.c.l.b16 %v27
  %v184 = vunpack.c.l.b16 %v28
  %v185 = vpack.c.b16 %v184, %v183
  %vm187 = vcmask 130048
  %v189 = vsel %vm187, %v173, 0
  %v192 = vsel %vm187, %v174, 0
  %v195 = vsel %vm187, %v175, 0
  %v198 = vsel %vm187, %v176, 0
  %v201 = vsel %vm187, %v177, 0
  %v204 = vsel %vm187, %v178, 0
  %v207 = vsel %vm187, %v179, 0
  %v210 = vsel %vm187, %v180, 0
  %212 = vmatprep.subr.bf16.mxu0 0
  %213 = vmatpush1.bf16.msra.mxu0 %v185
  %214 = vmatprep.subr.bf16.mxu0 0
  %215 = vmatpush1.bf16.msra.mxu0 0
  %216 = vmatprep.subr.bf16.mxu0 0
  %217 = vmatpush1.bf16.msra.mxu0 0
  %218 = vmatprep.subr.bf16.mxu0 0
  %219 = vmatpush1.bf16.msra.mxu0 0
  %220 = vmatprep.subr.bf16.mxu0 0
  %221 = vmatpush1.bf16.msra.mxu0 0
  %222 = vmatprep.subr.bf16.mxu0 0
  %223 = vmatpush1.bf16.msra.mxu0 0
  %224 = vmatprep.subr.bf16.mxu0 0
  %225 = vmatpush1.bf16.msra.mxu0 0
  %226 = vmatprep.subr.bf16.mxu0 0
  %227 = vmatpush1.bf16.msra.mxu0 0
  %228 = vmatprep.subr.bf16.mxu0 0
  %229 = vmatpush1.bf16.msra.mxu0 0
  %230 = vmatprep.subr.bf16.mxu0 0
  %231 = vmatpush1.bf16.msra.mxu0 0
  %232 = vmatprep.subr.bf16.mxu0 0
  %233 = vmatpush1.bf16.msra.mxu0 0
  %234 = vmatprep.subr.bf16.mxu0 0
  %235 = vmatpush1.bf16.msra.mxu0 0
  %236 = vmatprep.subr.bf16.mxu0 0
  %237 = vmatpush1.bf16.msra.mxu0 0
  %238 = vmatprep.subr.bf16.mxu0 0
  %239 = vmatpush1.bf16.msra.mxu0 0
  %240 = vmatprep.subr.bf16.mxu0 0
  %241 = vmatpush1.bf16.msra.mxu0 0
  %242 = vmatprep.subr.bf16.mxu0 0
  %243 = vmatpush1.bf16.msra.mxu0 0
  %244 = vmatprep.mubr.bf16.mxu0 0
  %245 = vmatmul.mubr.bf16.gmra.mrb[0].mxu0 %v189
  %v246 = vpop.f32.mrb[0].mxu0
  %v247 = vadd.f32 %v64, %v246
  %v248 = vpop.f32.mrb[0].mxu0
  %v249 = vpop.f32.mrb[0].mxu0
  %v250 = vadd.f32 %v69, %v249
  %v251 = vpop.f32.mrb[0].mxu0
  %252 = vmatprep.mubr.bf16.mxu0 0
  %253 = vmatmul.mubr.bf16.gmra.mrb[0].mxu0 %v192
  %v254 = vpop.f32.mrb[0].mxu0
  %v255 = vadd.f32 %v74, %v254
  %v256 = vpop.f32.mrb[0].mxu0
  %v257 = vpop.f32.mrb[0].mxu0
  %v258 = vadd.f32 %v79, %v257
  %v259 = vpop.f32.mrb[0].mxu0
  %260 = vmatprep.mubr.bf16.mxu0 0
  %261 = vmatmul.mubr.bf16.gmra.mrb[0].mxu0 %v195
  %v262 = vpop.f32.mrb[0].mxu0
  %v263 = vadd.f32 %v84, %v262
  %v264 = vpop.f32.mrb[0].mxu0
  %v265 = vpop.f32.mrb[0].mxu0
  %v266 = vadd.f32 %v89, %v265
  %v267 = vpop.f32.mrb[0].mxu0
  %268 = vmatprep.mubr.bf16.mxu0 0
  %269 = vmatmul.mubr.bf16.gmra.mrb[0].mxu0 %v198
  %v270 = vpop.f32.mrb[0].mxu0
  %v271 = vadd.f32 %v94, %v270
  %v272 = vpop.f32.mrb[0].mxu0
  %v273 = vpop.f32.mrb[0].mxu0
  %v274 = vadd.f32 %v99, %v273
  %v275 = vpop.f32.mrb[0].mxu0
  %276 = vmatprep.mubr.bf16.mxu0 0
  %277 = vmatmul.mubr.bf16.gmra.mrb[0].mxu0 %v201
  %v278 = vpop.f32.mrb[0].mxu0
  %v279 = vadd.f32 %v104, %v278
  %v280 = vpop.f32.mrb[0].mxu0
  %v281 = vpop.f32.mrb[0].mxu0
  %v282 = vadd.f32 %v109, %v281
  %v283 = vpop.f32.mrb[0].mxu0
  %284 = vmatprep.mubr.bf16.mxu0 0
  %285 = vmatmul.mubr.bf16.gmra.mrb[0].mxu0 %v204
  %v286 = vpop.f32.mrb[0].mxu0
  %v287 = vadd.f32 %v114, %v286
  %v288 = vpop.f32.mrb[0].mxu0
  %v289 = vpop.f32.mrb[0].mxu0
  %v290 = vadd.f32 %v119, %v289
  %v291 = vpop.f32.mrb[0].mxu0
  %292 = vmatprep.mubr.bf16.mxu0 0
  %293 = vmatmul.mubr.bf16.gmra.mrb[0].mxu0 %v207
  %v294 = vpop.f32.mrb[0].mxu0
  %v295 = vadd.f32 %v124, %v294
  %v296 = vpop.f32.mrb[0].mxu0
  %v297 = vpop.f32.mrb[0].mxu0
  %v298 = vadd.f32 %v129, %v297
  %v299 = vpop.f32.mrb[0].mxu0
  %300 = vmatprep.mubr.bf16.mxu0 0
  %301 = vmatmul.mubr.bf16.gmra.mrb[0].mxu0 %v210
  %v302 = vpop.f32.mrb[0].mxu0
  %v303 = vadd.f32 %v134, %v302
  %v304 = vpop.f32.mrb[0].mxu0
  %v305 = vpop.f32.mrb[0].mxu0
  %v306 = vadd.f32 %v139, %v305
  %v307 = vpop.f32.mrb[0].mxu0
  %308 = vdwg.mxu0
  %v309 = vmax.f32 %v247, 0.0
  %v310 = vmax.f32 %v250, 0.0
  %v311 = vmax.f32 %v255, 0.0
  %v312 = vmax.f32 %v258, 0.0
  %v313 = vmax.f32 %v263, 0.0
  %v314 = vmax.f32 %v266, 0.0
  %v315 = vmax.f32 %v271, 0.0
  %v316 = vmax.f32 %v274, 0.0
  %v317 = vmax.f32 %v279, 0.0
  %v318 = vmax.f32 %v282, 0.0
  %v319 = vmax.f32 %v287, 0.0
  %v320 = vmax.f32 %v290, 0.0
  %v321 = vmax.f32 %v295, 0.0
  %v322 = vmax.f32 %v298, 0.0
  %v323 = vmax.f32 %v303, 0.0
  %v324 = vmax.f32 %v306, 0.0
  %v325 = vpack.c.bf16 %v310, %v309
  %v326 = vpack.c.bf16 %v312, %v311
  %v327 = vpack.c.bf16 %v314, %v313
  %v328 = vpack.c.bf16 %v316, %v315
  %v329 = vpack.c.bf16 %v318, %v317
  %v330 = vpack.c.bf16 %v320, %v319
  %v331 = vpack.c.bf16 %v322, %v321
  %v332 = vpack.c.bf16 %v324, %v323
  %v333 = vld [vmem:[%s3] sm:$0xf]
  %v334 = vld [vmem:[%s3 + $0x4] sm:$0xf]
  %v335 = vld [vmem:[%s3 + $0x8] sm:$0xf]
  %v336 = vld [vmem:[%s3 + $0xc] sm:$0xf]
  %v337 = vld [vmem:[%s3 + $0x10] sm:$0xf]
  %v338 = vld [vmem:[%s3 + $0x14] sm:$0xf]
  %v339 = vld [vmem:[%s3 + $0x18] sm:$0xf]
  %v340 = vld [vmem:[%s3 + $0x1c] sm:$0xf]
  %v341 = vld [vmem:[%s3 + $0x20] sm:$0xf]
  %v342 = vld [vmem:[%s3 + $0x24] sm:$0xf]
  %v343 = vld [vmem:[%s3 + $0x28] sm:$0xf]
  %v344 = vld [vmem:[%s3 + $0x2c] sm:$0xf]
  %v345 = vld [vmem:[%s3 + $0x30] sm:$0xf]
  %v346 = vld [vmem:[%s3 + $0x34] sm:$0xf]
  %v347 = vld [vmem:[%s3 + $0x38] sm:$0xf]
  %v348 = vld [vmem:[%s3 + $0x3c] sm:$0xf]
  %v349 = vld [vmem:[%s4] sm:$0xff]
  %v350 = vld [vmem:[%s4 + $0x8] sm:$0xff]
  %v351 = vld [vmem:[%s4 + $0x10] sm:$0xff]
  %v352 = vld [vmem:[%s4 + $0x18] sm:$0xff]
  %v353 = vld [vmem:[%s4 + $0x20] sm:$0xff]
  %v354 = vld [vmem:[%s4 + $0x28] sm:$0xff]
  %v355 = vld [vmem:[%s4 + $0x30] sm:$0xff]
  %v356 = vld [vmem:[%s4 + $0x38] sm:$0xff]
  %v357 = vld [vmem:[%s4 + $0x40] sm:$0xff]
  %v358 = vld [vmem:[%s4 + $0x48] sm:$0xff]
  %v359 = vld [vmem:[%s4 + $0x50] sm:$0xff]
  %v360 = vld [vmem:[%s4 + $0x58] sm:$0xff]
  %v361 = vld [vmem:[%s4 + $0x60] sm:$0xff]
  %v362 = vld [vmem:[%s4 + $0x68] sm:$0xff]
  %v363 = vld [vmem:[%s4 + $0x70] sm:$0xff]
  %v364 = vld [vmem:[%s4 + $0x78] sm:$0xff]
  %366 = vset.pattern.permute.xlu0 0
  %367 = vperm.xlu0 %366, %v349
  %v368 = vpop.permute.xlu0 %367
  %371 = vset.pattern.permute.xlu0 0
  %372 = vperm.xlu0 %371, %v350
  %v373 = vpop.permute.xlu0 %372
  %376 = vset.pattern.permute.xlu0 0
  %377 = vperm.xlu0 %376, %v351
  %v378 = vpop.permute.xlu0 %377
  %381 = vset.pattern.permute.xlu0 0
  %382 = vperm.xlu0 %381, %v352
  %v383 = vpop.permute.xlu0 %382
  %386 = vset.pattern.permute.xlu0 0
  %387 = vperm.xlu0 %386, %v353
  %v388 = vpop.permute.xlu0 %387
  %391 = vset.pattern.permute.xlu0 0
  %392 = vperm.xlu0 %391, %v354
  %v393 = vpop.permute.xlu0 %392
  %396 = vset.pattern.permute.xlu0 0
  %397 = vperm.xlu0 %396, %v355
  %v398 = vpop.permute.xlu0 %397
  %401 = vset.pattern.permute.xlu0 0
  %402 = vperm.xlu0 %401, %v356
  %v403 = vpop.permute.xlu0 %402
  %406 = vset.pattern.permute.xlu0 0
  %407 = vperm.xlu0 %406, %v357
  %v408 = vpop.permute.xlu0 %407
  %411 = vset.pattern.permute.xlu0 0
  %412 = vperm.xlu0 %411, %v358
  %v413 = vpop.permute.xlu0 %412
  %416 = vset.pattern.permute.xlu0 0
  %417 = vperm.xlu0 %416, %v359
  %v418 = vpop.permute.xlu0 %417
  %421 = vset.pattern.permute.xlu0 0
  %422 = vperm.xlu0 %421, %v360
  %v423 = vpop.permute.xlu0 %422
  %426 = vset.pattern.permute.xlu0 0
  %427 = vperm.xlu0 %426, %v361
  %v428 = vpop.permute.xlu0 %427
  %431 = vset.pattern.permute.xlu0 0
  %432 = vperm.xlu0 %431, %v362
  %v433 = vpop.permute.xlu0 %432
  %436 = vset.pattern.permute.xlu0 0
  %437 = vperm.xlu0 %436, %v363
  %v438 = vpop.permute.xlu0 %437
  %441 = vset.pattern.permute.xlu0 0
  %442 = vperm.xlu0 %441, %v364
  %v443 = vpop.permute.xlu0 %442
  %v461 = vunpack.c.l.b16 %v333
  %v462 = vunpack.c.l.b16 %v334
  %v463 = vunpack.c.l.b16 %v335
  %v464 = vunpack.c.l.b16 %v336
  %v465 = vunpack.c.l.b16 %v337
  %v466 = vunpack.c.l.b16 %v338
  %v467 = vunpack.c.l.b16 %v339
  %v468 = vunpack.c.l.b16 %v340
  %v469 = vunpack.c.l.b16 %v341
  %v470 = vunpack.c.l.b16 %v342
  %v471 = vunpack.c.l.b16 %v343
  %v472 = vunpack.c.l.b16 %v344
  %v473 = vunpack.c.l.b16 %v345
  %v474 = vunpack.c.l.b16 %v346
  %v475 = vunpack.c.l.b16 %v347
  %v476 = vunpack.c.l.b16 %v348
  %v477 = vpack.c.b16 %v462, %v461
  %v478 = vpack.c.b16 %v464, %v463
  %v479 = vpack.c.b16 %v466, %v465
  %v480 = vpack.c.b16 %v468, %v467
  %v481 = vpack.c.b16 %v470, %v469
  %v482 = vpack.c.b16 %v472, %v471
  %v483 = vpack.c.b16 %v474, %v473
  %v484 = vpack.c.b16 %v476, %v475
  %493 = vmatprep.subr.bf16.mxu0 0
  %494 = vmatpush1.bf16.msra.mxu0 %v325
  %495 = vmatprep.subr.bf16.mxu0 0
  %496 = vmatpush1.bf16.msra.mxu0 %v326
  %497 = vmatprep.subr.bf16.mxu0 0
  %498 = vmatpush1.bf16.msra.mxu0 %v327
  %499 = vmatprep.subr.bf16.mxu0 0
  %500 = vmatpush1.bf16.msra.mxu0 %v328
  %501 = vmatprep.subr.bf16.mxu0 0
  %502 = vmatpush1.bf16.msra.mxu0 %v329
  %503 = vmatprep.subr.bf16.mxu0 0
  %504 = vmatpush1.bf16.msra.mxu0 %v330
  %505 = vmatprep.subr.bf16.mxu0 0
  %506 = vmatpush1.bf16.msra.mxu0 %v331
  %507 = vmatprep.subr.bf16.mxu0 0
  %508 = vmatpush1.bf16.msra.mxu0 %v332
  %509 = vmatprep.subr.bf16.mxu0 0
  %510 = vmatpush1.bf16.msra.mxu0 0
  %511 = vmatprep.subr.bf16.mxu0 0
  %512 = vmatpush1.bf16.msra.mxu0 0
  %513 = vmatprep.subr.bf16.mxu0 0
  %514 = vmatpush1.bf16.msra.mxu0 0
  %515 = vmatprep.subr.bf16.mxu0 0
  %516 = vmatpush1.bf16.msra.mxu0 0
  %517 = vmatprep.subr.bf16.mxu0 0
  %518 = vmatpush1.bf16.msra.mxu0 0
  %519 = vmatprep.subr.bf16.mxu0 0
  %520 = vmatpush1.bf16.msra.mxu0 0
  %521 = vmatprep.subr.bf16.mxu0 0
  %522 = vmatpush1.bf16.msra.mxu0 0
  %523 = vmatprep.subr.bf16.mxu0 0
  %524 = vmatpush1.bf16.msra.mxu0 0
  %525 = vmatprep.mubr.bf16.mxu0 0
  %526 = vmatmul.mubr.bf16.gmra.mrb[0].mxu0 %v477
  %v527 = vpop.f32.mrb[0].mxu0
  %v528 = vadd.f32 %v368, %v527
  %v529 = vpop.f32.mrb[0].mxu0
  %v530 = vpop.f32.mrb[0].mxu0
  %v531 = vadd.f32 %v373, %v530
  %v532 = vpop.f32.mrb[0].mxu0
  %533 = vmatprep.mubr.bf16.mxu0 0
  %534 = vmatmul.mubr.bf16.gmra.mrb[0].mxu0 %v478
  %v535 = vpop.f32.mrb[0].mxu0
  %v536 = vadd.f32 %v378, %v535
  %v537 = vpop.f32.mrb[0].mxu0
  %v538 = vpop.f32.mrb[0].mxu0
  %v539 = vadd.f32 %v383, %v538
  %v540 = vpop.f32.mrb[0].mxu0
  %541 = vmatprep.mubr.bf16.mxu0 0
  %542 = vmatmul.mubr.bf16.gmra.mrb[0].mxu0 %v479
  %v543 = vpop.f32.mrb[0].mxu0
  %v544 = vadd.f32 %v388, %v543
  %v545 = vpop.f32.mrb[0].mxu0
  %v546 = vpop.f32.mrb[0].mxu0
  %v547 = vadd.f32 %v393, %v546
  %v548 = vpop.f32.mrb[0].mxu0
  %549 = vmatprep.mubr.bf16.mxu0 0
  %550 = vmatmul.mubr.bf16.gmra.mrb[0].mxu0 %v480
  %v551 = vpop.f32.mrb[0].mxu0
  %v552 = vadd.f32 %v398, %v551
  %v553 = vpop.f32.mrb[0].mxu0
  %v554 = vpop.f32.mrb[0].mxu0
  %v555 = vadd.f32 %v403, %v554
  %v556 = vpop.f32.mrb[0].mxu0
  %557 = vmatprep.mubr.bf16.mxu0 0
  %558 = vmatmul.mubr.bf16.gmra.mrb[0].mxu0 %v481
  %v559 = vpop.f32.mrb[0].mxu0
  %v560 = vadd.f32 %v408, %v559
  %v561 = vpop.f32.mrb[0].mxu0
  %v562 = vpop.f32.mrb[0].mxu0
  %v563 = vadd.f32 %v413, %v562
  %v564 = vpop.f32.mrb[0].mxu0
  %565 = vmatprep.mubr.bf16.mxu0 0
  %566 = vmatmul.mubr.bf16.gmra.mrb[0].mxu0 %v482
  %v567 = vpop.f32.mrb[0].mxu0
  %v568 = vadd.f32 %v418, %v567
  %v569 = vpop.f32.mrb[0].mxu0
  %v570 = vpop.f32.mrb[0].mxu0
  %v571 = vadd.f32 %v423, %v570
  %v572 = vpop.f32.mrb[0].mxu0
  %573 = vmatprep.mubr.bf16.mxu0 0
  %574 = vmatmul.mubr.bf16.gmra.mrb[0].mxu0 %v483
  %v575 = vpop.f32.mrb[0].mxu0
  %v576 = vadd.f32 %v428, %v575
  %v577 = vpop.f32.mrb[0].mxu0
  %v578 = vpop.f32.mrb[0].mxu0
  %v579 = vadd.f32 %v433, %v578
  %v580 = vpop.f32.mrb[0].mxu0
  %581 = vmatprep.mubr.bf16.mxu0 0
  %582 = vmatmul.mubr.bf16.gmra.mrb[0].mxu0 %v484
  %v583 = vpop.f32.mrb[0].mxu0
  %v584 = vadd.f32 %v438, %v583
  %v585 = vpop.f32.mrb[0].mxu0
  %v586 = vpop.f32.mrb[0].mxu0
  %v587 = vadd.f32 %v443, %v586
  %v588 = vpop.f32.mrb[0].mxu0
  %589 = vdwg.mxu0
  %v590 = vmax.f32 %v528, 0.0
  %v591 = vmax.f32 %v531, 0.0
  %v592 = vmax.f32 %v536, 0.0
  %v593 = vmax.f32 %v539, 0.0
  %v594 = vmax.f32 %v544, 0.0
  %v595 = vmax.f32 %v547, 0.0
  %v596 = vmax.f32 %v552, 0.0
  %v597 = vmax.f32 %v555, 0.0
  %v598 = vmax.f32 %v560, 0.0
  %v599 = vmax.f32 %v563, 0.0
  %v600 = vmax.f32 %v568, 0.0
  %v601 = vmax.f32 %v571, 0.0
  %v602 = vmax.f32 %v576, 0.0
  %v603 = vmax.f32 %v579, 0.0
  %v604 = vmax.f32 %v584, 0.0
  %v605 = vmax.f32 %v587, 0.0
  %v606 = vpack.c.bf16 %v591, %v590
  %v607 = vpack.c.bf16 %v593, %v592
  %v608 = vpack.c.bf16 %v595, %v594
  %v609 = vpack.c.bf16 %v597, %v596
  %v610 = vpack.c.bf16 %v599, %v598
  %v611 = vpack.c.bf16 %v601, %v600
  %v612 = vpack.c.bf16 %v603, %v602
  %v613 = vpack.c.bf16 %v605, %v604
  %v614 = vld [vmem:[%s5] sm:$0xf]
  %v615 = vld [vmem:[%s6] sm:$0xff]
  %617 = vset.pattern.permute.xlu0 0
  %618 = vperm.xlu0 %617, %v615
  %v619 = vpop.permute.xlu0 %618
  %621 = vmatprep.subr.bf16.mxu0 0
  %622 = vmatpush1.bf16.msra.mxu0 %v606
  %623 = vmatprep.subr.bf16.mxu0 0
  %624 = vmatpush1.bf16.msra.mxu0 %v607
  %625 = vmatprep.subr.bf16.mxu0 0
  %626 = vmatpush1.bf16.msra.mxu0 %v608
  %627 = vmatprep.subr.bf16.mxu0 0
  %628 = vmatpush1.bf16.msra.mxu0 %v609
  %629 = vmatprep.subr.bf16.mxu0 0
  %630 = vmatpush1.bf16.msra.mxu0 %v610
  %631 = vmatprep.subr.bf16.mxu0 0
  %632 = vmatpush1.bf16.msra.mxu0 %v611
  %633 = vmatprep.subr.bf16.mxu0 0
  %634 = vmatpush1.bf16.msra.mxu0 %v612
  %635 = vmatprep.subr.bf16.mxu0 0
  %636 = vmatpush1.bf16.msra.mxu0 %v613
  %637 = vmatprep.subr.bf16.mxu0 0
  %638 = vmatpush1.bf16.msra.mxu0 0
  %639 = vmatprep.subr.bf16.mxu0 0
  %640 = vmatpush1.bf16.msra.mxu0 0
  %641 = vmatprep.subr.bf16.mxu0 0
  %642 = vmatpush1.bf16.msra.mxu0 0
  %643 = vmatprep.subr.bf16.mxu0 0
  %644 = vmatpush1.bf16.msra.mxu0 0
  %645 = vmatprep.subr.bf16.mxu0 0
  %646 = vmatpush1.bf16.msra.mxu0 0
  %647 = vmatprep.subr.bf16.mxu0 0
  %648 = vmatpush1.bf16.msra.mxu0 0
  %649 = vmatprep.subr.bf16.mxu0 0
  %650 = vmatpush1.bf16.msra.mxu0 0
  %651 = vmatprep.subr.bf16.mxu0 0
  %652 = vmatpush1.bf16.msra.mxu0 0
  %653 = vmatprep.mubr.bf16.mxu0 0
  %654 = vmatmul.mubr.bf16.gmra.mrb[0].mxu0 %v614
  %v655 = vpop.f32.mrb[0].mxu0
  %v656 = vadd.f32 %v619, %v655
  %v657 = vpop.f32.mrb[0].mxu0
  %v658 = vpop.f32.mrb[0].mxu0
  %v659 = vpop.f32.mrb[0].mxu0
  %660 = vdwg.mxu0
  %661 = vst [vmem:[%s7] sm:$0xff] %v656
  // Predicated region
  $region30: #{qnetwork_forward_pallas.1} parent=0 // pred_check
    _
  $region31: #{qnetwork_forward_pallas.1} parent=0 // pred_check_branch
    %663 = sbr.rel (0) target = $region33
  $region32: #{qnetwork_forward_pallas.1} parent=0 // pred_region
    _
  $region33: #{qnetwork_forward_pallas.1} parent=0 // pred_fallthru
    _
  // Predicated region
  $region34: #{qnetwork_forward_pallas.1} parent=0 // pred_check
    _
  $region35: #{qnetwork_forward_pallas.1} parent=0 // pred_check_branch
    %665 = sbr.rel (0) target = $region37
  $region36: #{qnetwork_forward_pallas.1} parent=0 // pred_region
    _
  $region37: #{qnetwork_forward_pallas.1} parent=0 // pred_fallthru
    _

</llo_original>
